<compile_context>
chip_gen: v6e
topology: v6e:2x2x1
jax: 0.10.0
libtpu: 0.0.40
codegen_flags: <defaults>
</compile_context>

<pallas_src>
import jax
import jax.numpy as jnp
from jax.experimental import pallas as pl
from jax.experimental.pallas import tpu as pltpu

EPS = 1e-5
_LANE = 128
_BF16, _F32 = 2, 4


def _round_up(v, m):
    return ((v + m - 1) // m) * m


def _vmem_capacity_bytes():
    try:
        info = pltpu.get_tpu_info()
        cap = int(getattr(info, "vmem_capacity_bytes", 0))
        if cap > 0:
            return cap
    except Exception:
        pass
    return 64 << 20  # conservative fallback (v7x per-core VMEM)


_VMEM_CAP = _vmem_capacity_bytes()
_VMEM_BUDGET = int(_VMEM_CAP * 0.7)


def _vmem_limit(usage_bytes):
    return int(min(_VMEM_CAP - (2 << 20),
                   max(int(usage_bytes * 1.5) + (8 << 20), 32 << 20)))


def _largest_divisor_tile(dim, cap, prefer_multiple=128):
    """Largest divisor of `dim` (dim is a 128-multiple) that is a multiple of
    `prefer_multiple` and <= cap; falls back to 128-multiples, then 128."""
    cap = max(int(cap), 128)
    for mult in (prefer_multiple, 128):
        best = 0
        for c in range(mult, min(dim, cap) + 1, mult):
            if dim % c == 0:
                best = c
        if best:
            return best
    return 128


def _plan_stage1(batch, raw_p, emb_p, budget):
    """Pick (tk, te) for the encoder+BN kernel under the VMEM budget."""
    te_cap = 512
    if emb_p >= 256:
        te_cap = min(te_cap, emb_p // 2)          # >=2 parallel emb tiles (v7x megacore)
    te = _largest_divisor_tile(emb_p, te_cap, 128)
    tk = _largest_divisor_tile(raw_p, 512, 256)    # 256-deep slabs fill v6e/v7x MXU

    def usage(tk_, te_):
        return (2 * batch * tk_ * _BF16            # x tile (double-buffered)
                + 2 * tk_ * te_ * _BF16            # W1 slab (double-buffered)
                + 2 * batch * te_ * _BF16          # h_bn output tile
                + batch * te_ * _F32               # f32 accumulator scratch
                + 6 * te_ * _F32)                  # b1 / gamma / beta

    while usage(tk, te) > budget and (tk > 128 or te > 128):
        if tk >= te and tk > 128:
            tk = _largest_divisor_tile(raw_p, tk // 2, 128)
        else:
            te = _largest_divisor_tile(emb_p, te // 2, 128)
    return tk, te, usage(tk, te)


def _plan_stage2(batch, raw_p, emb_p, budget):
    """Pick (tm, tn) for the decoder kernel under the VMEM budget."""
    tn_cap = 512
    if raw_p >= 256:
        tn_cap = min(tn_cap, raw_p // 2)           # >=2 parallel column tiles (v7x)
    slab_cap = max(128, ((budget // 3) // (2 * emb_p * _BF16)) // 128 * 128)
    tn = _largest_divisor_tile(raw_p, min(tn_cap, slab_cap), 128)

    def usage(tm_, tn_):
        return (2 * tm_ * emb_p * _BF16            # h_bn tile (double-buffered)
                + 2 * emb_p * tn_ * _BF16          # W2 slab
                + 2 * tm_ * tn_ * _F32             # output tile
                + 2 * tn_ * _F32)                  # b2 slice

    tm = batch
    for cand in (batch, 2048, 1024, 512, 256, 128, 64, 32, 16, 8):
        if 0 < cand <= batch and batch % cand == 0 and usage(cand, tn) <= budget:
            tm = cand
            break
    return tm, tn, usage(tm, tn)


# ------------- stage 1: encoder matmul (K-tiled) + BatchNorm finalize -------------
def _encoder_bn_kernel(x_ref, w1_ref, b1_ref, gamma_ref, beta_ref, h_ref, acc_ref):
    k = pl.program_id(1)

    @pl.when(k == 0)
    def _():
        acc_ref[...] = jnp.zeros_like(acc_ref)

    # bf16 x bf16 -> f32 accumulate on the MXU.
    acc_ref[...] += jnp.dot(x_ref[...], w1_ref[...],
                            preferred_element_type=jnp.float32)

    @pl.when(k == pl.num_programs(1) - 1)
    def _():
        h = acc_ref[...] + b1_ref[...]                       # (batch, te) f32
        # Training-mode BatchNorm1d stats over the full batch (per-feature,
        # so per-emb-tile statistics are exact). Biased variance, eps=1e-5.
        mean = jnp.mean(h, axis=0, keepdims=True)
        centered = h - mean
        var = jnp.mean(centered * centered, axis=0, keepdims=True)
        scale = gamma_ref[...] * jax.lax.rsqrt(var + EPS)
        shift = beta_ref[...] - mean * scale
        h_ref[...] = (h * scale + shift).astype(h_ref.dtype)


# ------------- stage 2: decoder matmul (N / M parallel tiles) -------------
def _decoder_kernel(h_ref, w2_ref, b2_ref, o_ref):
    o_ref[...] = (jnp.dot(h_ref[...], w2_ref[...],
                          preferred_element_type=jnp.float32)
                  + b2_ref[...]).astype(o_ref.dtype)


def prepare_params(w1_t, b1, gamma, beta, w2_t, b2):
    """One-time cast+pad of parameters (hoisted out of the per-call forward).

    Padded emb columns keep gamma/beta at zero so scale=shift=0 and the pads
    stay numerically inert through BatchNorm; padded raw rows/cols of W1/W2
    are zero so both matmuls stay exact.
    """
    raw_dim, emb_dim = w1_t.shape
    raw_p = _round_up(raw_dim, _LANE)
    emb_p = _round_up(emb_dim, _LANE)
    pr, pe = raw_p - raw_dim, emb_p - emb_dim
    w1_p = jnp.pad(jnp.asarray(w1_t, jnp.bfloat16), ((0, pr), (0, pe)))
    b1_p = jnp.pad(jnp.asarray(b1, jnp.float32).reshape(1, -1), ((0, 0), (0, pe)))
    gamma_p = jnp.pad(jnp.asarray(gamma, jnp.float32).reshape(1, -1), ((0, 0), (0, pe)))
    beta_p = jnp.pad(jnp.asarray(beta, jnp.float32).reshape(1, -1), ((0, 0), (0, pe)))
    w2_p = jnp.pad(jnp.asarray(w2_t, jnp.bfloat16), ((0, pe), (0, pr)))
    b2_p = jnp.pad(jnp.asarray(b2, jnp.float32).reshape(1, -1), ((0, 0), (0, pr)))
    return (w1_p, b1_p, gamma_p, beta_p, w2_p, b2_p)


@jax.jit
def autoencoder_bn_forward(x, params):
    """x: (B, ...) flattened to (B, raw_dim); params from prepare_params()."""
    w1_p, b1_p, gamma_p, beta_p, w2_p, b2_p = params
    batch = x.shape[0]
    x2d = x.reshape(batch, -1)
    raw_dim = x2d.shape[1]
    raw_p, emb_p = w1_p.shape
    assert w2_p.shape == (emb_p, raw_p)
    assert _round_up(raw_dim, _LANE) == raw_p, "params prepared for another raw_dim"

    x_b = x2d.astype(jnp.bfloat16)
    if raw_p != raw_dim:
        x_b = jnp.pad(x_b, ((0, 0), (0, raw_p - raw_dim)))

    # ---------------- stage 1: encoder + BatchNorm ----------------
    tk, te, enc_usage = _plan_stage1(batch, raw_p, emb_p, _VMEM_BUDGET)
    ne, nk = emb_p // te, raw_p // tk
    enc_cost = pl.CostEstimate(
        flops=2 * batch * raw_p * emb_p + 10 * batch * emb_p,
        transcendentals=emb_p,
        bytes_accessed=(batch * raw_p * _BF16 + raw_p * emb_p * _BF16
                        + 3 * emb_p * _F32 + batch * emb_p * _BF16))

    h_bn = pl.pallas_call(
        _encoder_bn_kernel,
        out_shape=jax.ShapeDtypeStruct((batch, emb_p), jnp.bfloat16),
        grid=(ne, nk),
        in_specs=[
            pl.BlockSpec((batch, tk), lambda e, k: (0, k)),   # x
            pl.BlockSpec((tk, te), lambda e, k: (k, e)),      # W1^T slab
            pl.BlockSpec((1, te), lambda e, k: (0, e)),       # b1
            pl.BlockSpec((1, te), lambda e, k: (0, e)),       # gamma
            pl.BlockSpec((1, te), lambda e, k: (0, e)),       # beta
        ],
        out_specs=pl.BlockSpec((batch, te), lambda e, k: (0, e)),
        scratch_shapes=[pltpu.VMEM((batch, te), jnp.float32)],
        compiler_params=pltpu.CompilerParams(
            dimension_semantics=("parallel", "arbitrary"),
            vmem_limit_bytes=_vmem_limit(enc_usage)),
        cost_estimate=enc_cost,
    )(x_b, w1_p, b1_p, gamma_p, beta_p)

    # ---------------- stage 2: decoder ----------------
    tm, tn, dec_usage = _plan_stage2(batch, raw_p, emb_p, _VMEM_BUDGET)
    nn_t, nm = raw_p // tn, batch // tm
    dec_cost = pl.CostEstimate(
        flops=2 * batch * emb_p * raw_p,
        transcendentals=0,
        bytes_accessed=(nn_t * batch * emb_p * _BF16 + emb_p * raw_p * _BF16
                        + raw_p * _F32 + batch * raw_p * _F32))

    out_p = pl.pallas_call(
        _decoder_kernel,
        out_shape=jax.ShapeDtypeStruct((batch, raw_p), jnp.float32),
        grid=(nn_t, nm),
        in_specs=[
            pl.BlockSpec((tm, emb_p), lambda n, m: (m, 0)),   # h_bn tile
            pl.BlockSpec((emb_p, tn), lambda n, m: (0, n)),   # W2^T column slab
            pl.BlockSpec((1, tn), lambda n, m: (0, n)),       # b2 slice
        ],
        out_specs=pl.BlockSpec((tm, tn), lambda n, m: (m, n)),
        compiler_params=pltpu.CompilerParams(
            dimension_semantics=("parallel", "parallel"),
            vmem_limit_bytes=_vmem_limit(dec_usage)),
        cost_estimate=dec_cost,
    )(h_bn, w2_p, b2_p)

    if raw_p != raw_dim:
        out_p = out_p[:, :raw_dim]
    return out_p


def init_params(key, raw_dim, emb_dim):
    """Deterministic init mimicking nn.Linear defaults (U(-1/sqrt(fan_in), ..))."""
    k1, k2, k3, k4 = jax.random.split(key, 4)
    bound1 = 1.0 / jnp.sqrt(raw_dim)
    bound2 = 1.0 / jnp.sqrt(emb_dim)
    # encoder Linear: weight (emb, raw) -> stored transposed (raw, emb)
    w1_t = jax.random.uniform(k1, (raw_dim, emb_dim), jnp.float32, -bound1, bound1)
    b1 = jax.random.uniform(k2, (emb_dim,), jnp.float32, -bound1, bound1)
    # BatchNorm1d affine params (defaults gamma=1, beta=0)
    gamma = jnp.ones((emb_dim,), jnp.float32)
    beta = jnp.zeros((emb_dim,), jnp.float32)
    # decoder Linear: weight (raw, emb) -> stored transposed (emb, raw)
    w2_t = jax.random.uniform(k3, (emb_dim, raw_dim), jnp.float32, -bound2, bound2)
    b2 = jax.random.uniform(k4, (raw_dim,), jnp.float32, -bound2, bound2)
    return w1_t, b1, gamma, beta, w2_t, b2


def reference_forward(x, w1_t, b1, gamma, beta, w2_t, b2):
    """Pure-JAX reference with the same bf16-matmul / f32-BN precision choices."""
    x2d = x.reshape(x.shape[0], -1)
    h = jnp.dot(x2d.astype(jnp.bfloat16), w1_t.astype(jnp.bfloat16),
                preferred_element_type=jnp.float32) + b1.reshape(1, -1)
    mean = jnp.mean(h, axis=0, keepdims=True)
    var = jnp.mean((h - mean) ** 2, axis=0, keepdims=True)
    scale = gamma.reshape(1, -1) * jax.lax.rsqrt(var + EPS)
    shift = beta.reshape(1, -1) - mean * scale
    h_bn = (h * scale + shift).astype(jnp.bfloat16)
    return jnp.dot(h_bn, w2_t.astype(jnp.bfloat16),
                   preferred_element_type=jnp.float32) + b2.reshape(1, -1)


if __name__ == "__main__":
    key = jax.random.PRNGKey(0)

    # Test 1: small, lane-unaligned dims (exercises padding); x is 3-D so the
    # module's view(B, -1) flatten is exercised too.
    raw_dim, emb_dim, batch = 64, 32, 8
    kx, kp, key = jax.random.split(key, 3)
    x = jax.random.normal(kx, (batch, 8, 8), jnp.float32).astype(jnp.bfloat16)
    raw_params = init_params(kp, raw_dim, emb_dim)
    params = prepare_params(*raw_params)           # one-time cast+pad
    out = jax.block_until_ready(autoencoder_bn_forward(x, params))
    ref = reference_forward(x, *raw_params)
    assert out.shape == (batch, raw_dim)
    assert jnp.allclose(out, ref, atol=2e-2, rtol=2e-2), "mismatch (small case)"

    # Test 2: lane-aligned dims exercising a 3-step K reduction (tk=256),
    # a 2-tile parallel emb axis in stage 1, and 2-tile parallel output
    # columns in stage 2.
    raw_dim, emb_dim, batch = 768, 256, 16
    kx, kp = jax.random.split(key)
    x = jax.random.normal(kx, (batch, raw_dim), jnp.float32).astype(jnp.bfloat16)
    raw_params = init_params(kp, raw_dim, emb_dim)
    params = prepare_params(*raw_params)
    out = jax.block_until_ready(autoencoder_bn_forward(x, params))
    ref = reference_forward(x, *raw_params)
    assert out.shape == (batch, raw_dim)
    assert jnp.allclose(out, ref, atol=2e-2, rtol=2e-2), "mismatch (tiled case)"

    print("KERNEL_OK")
</pallas_src>

<mosaic_0001>
module attributes {stable_mosaic.version = 11 : i64} {
  func.func @_encoder_bn_kernel(%arg0: i32, %arg1: i32, %arg2: memref<8x128xbf16, #tpu.memory_space<vmem>>, %arg3: memref<128x128xbf16, #tpu.memory_space<vmem>>, %arg4: memref<1x128xf32, #tpu.memory_space<vmem>>, %arg5: memref<1x128xf32, #tpu.memory_space<vmem>>, %arg6: memref<1x128xf32, #tpu.memory_space<vmem>>, %arg7: memref<8x128xbf16, #tpu.memory_space<vmem>>, %arg8: memref<8x128xf32, #tpu.memory_space<vmem>>) attributes {dimension_semantics = [#tpu.dimension_semantics<parallel>, #tpu.dimension_semantics<arbitrary>], iteration_bounds = array<i64: 1, 1>, scalar_prefetch = 0 : i64, scratch_operands = 1 : i64, tpu.core_type = #tpu.core_type<tc>, window_params = [{transform_indices = @transform_0, window_bounds = array<i64: 8, 128>}, {transform_indices = @transform_1, window_bounds = array<i64: 128, 128>}, {transform_indices = @transform_2, window_bounds = array<i64: 1, 128>}, {transform_indices = @transform_3, window_bounds = array<i64: 1, 128>}, {transform_indices = @transform_4, window_bounds = array<i64: 1, 128>}, {transform_indices = @transform_5, window_bounds = array<i64: 8, 128>}]} {
    %c0_i32 = arith.constant 0 : i32
    %0 = arith.cmpi eq, %arg1, %c0_i32 : i32
    %1 = arith.extui %0 : i1 to i32
    %c0_i32_0 = arith.constant 0 : i32
    %2 = arith.cmpi ne, %1, %c0_i32_0 : i32
    scf.if %2 {
      %cst_10 = arith.constant 0.000000e+00 : f32
      %12 = vector.broadcast %cst_10 : f32 to vector<8x128xf32>
      %c0_11 = arith.constant 0 : index
      %c0_12 = arith.constant 0 : index
      %13 = vector.load %arg8[%c0_11, %c0_12] : memref<8x128xf32, #tpu.memory_space<vmem>>, vector<8x128xf32>
      tpu.vector_store %arg8[%c0_11, %c0_12], %12 {strides = array<i32>} : memref<8x128xf32, #tpu.memory_space<vmem>>, vector<8x128xf32>,
    } else {
    }
    %c0 = arith.constant 0 : index
    %c0_1 = arith.constant 0 : index
    %3 = vector.load %arg8[%c0, %c0_1] : memref<8x128xf32, #tpu.memory_space<vmem>>, vector<8x128xf32>
    %c0_2 = arith.constant 0 : index
    %c0_3 = arith.constant 0 : index
    %4 = vector.load %arg2[%c0_2, %c0_3] : memref<8x128xbf16, #tpu.memory_space<vmem>>, vector<8x128xbf16>
    %c0_4 = arith.constant 0 : index
    %c0_5 = arith.constant 0 : index
    %5 = vector.load %arg3[%c0_4, %c0_5] : memref<128x128xbf16, #tpu.memory_space<vmem>>, vector<128x128xbf16>
    %cst = arith.constant dense<0.000000e+00> : vector<8x128xf32>
    %6 = tpu.matmul %4, %5, %cst {dimension_numbers = #tpu.dot_dimension_numbers<[1], [0], [0], [1], [0, 0, 1, 1], [], []>} : vector<8x128xbf16>, vector<128x128xbf16>, vector<8x128xf32> -> vector<8x128xf32>
    %7 = arith.addf %3, %6 : vector<8x128xf32>
    %c0_6 = arith.constant 0 : index
    %c0_7 = arith.constant 0 : index
    %8 = vector.load %arg8[%c0_6, %c0_7] : memref<8x128xf32, #tpu.memory_space<vmem>>, vector<8x128xf32>
    tpu.vector_store %arg8[%c0_6, %c0_7], %7 {strides = array<i32>} : memref<8x128xf32, #tpu.memory_space<vmem>>, vector<8x128xf32>,
    %c0_i32_8 = arith.constant 0 : i32
    %9 = arith.cmpi eq, %arg1, %c0_i32_8 : i32
    %10 = arith.extui %9 : i1 to i32
    %c0_i32_9 = arith.constant 0 : i32
    %11 = arith.cmpi ne, %10, %c0_i32_9 : i32
    scf.if %11 {
      %c0_10 = arith.constant 0 : index
      %c0_11 = arith.constant 0 : index
      %12 = vector.load %arg8[%c0_10, %c0_11] : memref<8x128xf32, #tpu.memory_space<vmem>>, vector<8x128xf32>
      %c0_12 = arith.constant 0 : index
      %c0_13 = arith.constant 0 : index
      %13 = vector.load %arg4[%c0_12, %c0_13] : memref<1x128xf32, #tpu.memory_space<vmem>>, vector<1x128xf32>
      %14 = vector.broadcast %13 : vector<1x128xf32> to vector<8x128xf32>
      %15 = arith.addf %12, %14 : vector<8x128xf32>
      %cst_14 = arith.constant dense<0.000000e+00> : vector<128xf32>
      %16 = vector.multi_reduction <add>, %15, %cst_14 [0] : vector<8x128xf32> to vector<128xf32>
      %17 = vector.shape_cast %16 : vector<128xf32> to vector<1x128xf32>
      %cst_15 = arith.constant 8.000000e+00 : f32
      %18 = vector.broadcast %cst_15 : f32 to vector<1x128xf32>
      %19 = arith.divf %17, %18 : vector<1x128xf32>
      %20 = vector.broadcast %19 : vector<1x128xf32> to vector<8x128xf32>
      %21 = arith.subf %15, %20 : vector<8x128xf32>
      %22 = arith.mulf %21, %21 : vector<8x128xf32>
      %cst_16 = arith.constant dense<0.000000e+00> : vector<128xf32>
      %23 = vector.multi_reduction <add>, %22, %cst_16 [0] : vector<8x128xf32> to vector<128xf32>
      %24 = vector.shape_cast %23 : vector<128xf32> to vector<1x128xf32>
      %cst_17 = arith.constant 8.000000e+00 : f32
      %25 = vector.broadcast %cst_17 : f32 to vector<1x128xf32>
      %26 = arith.divf %24, %25 : vector<1x128xf32>
      %c0_18 = arith.constant 0 : index
      %c0_19 = arith.constant 0 : index
      %27 = vector.load %arg5[%c0_18, %c0_19] : memref<1x128xf32, #tpu.memory_space<vmem>>, vector<1x128xf32>
      %cst_20 = arith.constant 9.99999974E-6 : f32
      %28 = vector.broadcast %cst_20 : f32 to vector<1x128xf32>
      %29 = arith.addf %26, %28 : vector<1x128xf32>
      %30 = math.rsqrt %29 : vector<1x128xf32>
      %31 = arith.mulf %27, %30 : vector<1x128xf32>
      %c0_21 = arith.constant 0 : index
      %c0_22 = arith.constant 0 : index
      %32 = vector.load %arg6[%c0_21, %c0_22] : memref<1x128xf32, #tpu.memory_space<vmem>>, vector<1x128xf32>
      %33 = arith.mulf %19, %31 : vector<1x128xf32>
      %34 = arith.subf %32, %33 : vector<1x128xf32>
      %35 = vector.broadcast %31 : vector<1x128xf32> to vector<8x128xf32>
      %36 = arith.mulf %15, %35 : vector<8x128xf32>
      %37 = vector.broadcast %34 : vector<1x128xf32> to vector<8x128xf32>
      %38 = arith.addf %36, %37 : vector<8x128xf32>
      %39 = arith.truncf %38 : vector<8x128xf32> to vector<8x128xbf16>
      %c0_23 = arith.constant 0 : index
      %c0_24 = arith.constant 0 : index
      %40 = vector.load %arg7[%c0_23, %c0_24] : memref<8x128xbf16, #tpu.memory_space<vmem>>, vector<8x128xbf16>
      tpu.vector_store %arg7[%c0_23, %c0_24], %39 {strides = array<i32>} : memref<8x128xbf16, #tpu.memory_space<vmem>>, vector<8x128xbf16>,
    } else {
    }
    return
  }
  func.func @transform_0(%arg0: i32, %arg1: i32) -> (i32, i32) {
    %c0_i32 = arith.constant 0 : i32
    %c0_i32_0 = arith.constant 0 : i32
    return %c0_i32, %arg1 : i32, i32
  }
  func.func @transform_1(%arg0: i32, %arg1: i32) -> (i32, i32) {
    %c0_i32 = arith.constant 0 : i32
    return %arg1, %arg0 : i32, i32
  }
  func.func @transform_2(%arg0: i32, %arg1: i32) -> (i32, i32) {
    %c0_i32 = arith.constant 0 : i32
    %c0_i32_0 = arith.constant 0 : i32
    return %c0_i32, %arg0 : i32, i32
  }
  func.func @transform_3(%arg0: i32, %arg1: i32) -> (i32, i32) {
    %c0_i32 = arith.constant 0 : i32
    %c0_i32_0 = arith.constant 0 : i32
    return %c0_i32, %arg0 : i32, i32
  }
  func.func @transform_4(%arg0: i32, %arg1: i32) -> (i32, i32) {
    %c0_i32 = arith.constant 0 : i32
    %c0_i32_0 = arith.constant 0 : i32
    return %c0_i32, %arg0 : i32, i32
  }
  func.func @transform_5(%arg0: i32, %arg1: i32) -> (i32, i32) {
    %c0_i32 = arith.constant 0 : i32
    %c0_i32_0 = arith.constant 0 : i32
    return %c0_i32, %arg0 : i32, i32
  }
}

module attributes {stable_mosaic.version = 11 : i64} {
  func.func @_decoder_kernel(%arg0: i32, %arg1: i32, %arg2: memref<8x128xbf16, #tpu.memory_space<vmem>>, %arg3: memref<128x128xbf16, #tpu.memory_space<vmem>>, %arg4: memref<1x128xf32, #tpu.memory_space<vmem>>, %arg5: memref<8x128xf32, #tpu.memory_space<vmem>>) attributes {dimension_semantics = [#tpu.dimension_semantics<parallel>, #tpu.dimension_semantics<parallel>], iteration_bounds = array<i64: 1, 1>, scalar_prefetch = 0 : i64, scratch_operands = 0 : i64, tpu.core_type = #tpu.core_type<tc>, window_params = [{transform_indices = @transform_0, window_bounds = array<i64: 8, 128>}, {transform_indices = @transform_1, window_bounds = array<i64: 128, 128>}, {transform_indices = @transform_2, window_bounds = array<i64: 1, 128>}, {transform_indices = @transform_3, window_bounds = array<i64: 8, 128>}]} {
    %c0 = arith.constant 0 : index
    %c0_0 = arith.constant 0 : index
    %0 = vector.load %arg2[%c0, %c0_0] : memref<8x128xbf16, #tpu.memory_space<vmem>>, vector<8x128xbf16>
    %c0_1 = arith.constant 0 : index
    %c0_2 = arith.constant 0 : index
    %1 = vector.load %arg3[%c0_1, %c0_2] : memref<128x128xbf16, #tpu.memory_space<vmem>>, vector<128x128xbf16>
    %cst = arith.constant dense<0.000000e+00> : vector<8x128xf32>
    %2 = tpu.matmul %0, %1, %cst {dimension_numbers = #tpu.dot_dimension_numbers<[1], [0], [0], [1], [0, 0, 1, 1], [], []>} : vector<8x128xbf16>, vector<128x128xbf16>, vector<8x128xf32> -> vector<8x128xf32>
    %c0_3 = arith.constant 0 : index
    %c0_4 = arith.constant 0 : index
    %3 = vector.load %arg4[%c0_3, %c0_4] : memref<1x128xf32, #tpu.memory_space<vmem>>, vector<1x128xf32>
    %4 = vector.broadcast %3 : vector<1x128xf32> to vector<8x128xf32>
    %5 = arith.addf %2, %4 : vector<8x128xf32>
    %c0_5 = arith.constant 0 : index
    %c0_6 = arith.constant 0 : index
    %6 = vector.load %arg5[%c0_5, %c0_6] : memref<8x128xf32, #tpu.memory_space<vmem>>, vector<8x128xf32>
    tpu.vector_store %arg5[%c0_5, %c0_6], %5 {strides = array<i32>} : memref<8x128xf32, #tpu.memory_space<vmem>>, vector<8x128xf32>,
    return
  }
  func.func @transform_0(%arg0: i32, %arg1: i32) -> (i32, i32) {
    %c0_i32 = arith.constant 0 : i32
    %c0_i32_0 = arith.constant 0 : i32
    return %arg1, %c0_i32 : i32, i32
  }
  func.func @transform_1(%arg0: i32, %arg1: i32) -> (i32, i32) {
    %c0_i32 = arith.constant 0 : i32
    %c0_i32_0 = arith.constant 0 : i32
    return %c0_i32, %arg0 : i32, i32
  }
  func.func @transform_2(%arg0: i32, %arg1: i32) -> (i32, i32) {
    %c0_i32 = arith.constant 0 : i32
    %c0_i32_0 = arith.constant 0 : i32
    return %c0_i32, %arg0 : i32, i32
  }
  func.func @transform_3(%arg0: i32, %arg1: i32) -> (i32, i32) {
    %c0_i32 = arith.constant 0 : i32
    return %arg1, %arg0 : i32, i32
  }
}

</mosaic_0001>

<llo_original>
// kernel: autoencoder_bn_forward.2
$region0: #{autoencoder_bn_forward.2}
  #allocation0 [shape = 'u32[]', space=smem, size = 0x4, offset = 0x4, fixed_abs, tag = 'smem constant byte address 0x4 - core index']
  #allocation1 [shape = 'u32[144,128]{1,0:T(1,128)}', space=vmem, size = 0x12000, scoped, tag = 'internal scratch']
  #allocation2 [shape = 'f32[8,128]{1,0:T(8,128)}', space=vmem, size = 0x1000, scoped, tag = 'scratch operand']
  %s0 = inlined_call_operand.vmem [shape: bf16[8,128], index: 0, kind: input, shape index: {}]
  %s1 = inlined_call_operand.hbm [shape: bf16[128,128], index: 1, kind: input, shape index: {}]
  %s2 = inlined_call_operand.hbm [shape: f32[1,128], index: 2, kind: input, shape index: {}]
  %s3 = inlined_call_operand.hbm [shape: f32[1,128], index: 3, kind: input, shape index: {}]
  %s4 = inlined_call_operand.hbm [shape: f32[1,128], index: 4, kind: input, shape index: {}]
  %s5 = inlined_call_operand.vmem [shape: bf16[8,128], index: 5, kind: output, shape index: {}]
  %s6 = sld [smem:[#allocation0]]
  $region54: #{autoencoder_bn_forward.2} parent=0
    _
  %s8 = ssub.s32 1, %s6
  %s9 = scalar_select 0, %s8, %s6
  $region1: #{autoencoder_bn_forward.2} parent=0
    #allocation3 [shape = 'u8[32768]{0}', space=vmem, size = 0x8000, scoped, tag = 'input window, operand 1, single buffered']
    #allocation4 [shape = 's32[1]{0}', space=sflag, size = 0x4, scoped, tag = 'scoped memory for autoencoder_bn_forward.2']
    #allocation5 [shape = 'u8[512]{0}', space=vmem, size = 0x400, scoped, tag = 'input window, operand 2, single buffered']
    #allocation6 [shape = 's32[1]{0}', space=sflag, size = 0x4, scoped, tag = 'scoped memory for autoencoder_bn_forward.2']
    #allocation7 [shape = 'u8[512]{0}', space=vmem, size = 0x400, scoped, tag = 'input window, operand 3, single buffered']
    #allocation8 [shape = 'u8[512]{0}', space=vmem, size = 0x400, scoped, tag = 'input window, operand 4, single buffered']
    #allocation9 [shape = 's32[1]{0}', space=sflag, size = 0x4, scoped, tag = 'scoped memory for autoencoder_bn_forward.2']
    %10 = vsyncpa [#allocation4], 0
    %11 = vsyncpa [#allocation6], 0
    %12 = vsyncpa [#allocation9], 0
    // Predicated region
    $region2: #{autoencoder_bn_forward.2} parent=1 // pred_check
      _
    $region3: #{autoencoder_bn_forward.2} parent=1 // pred_check_branch
      %14 = sbr.rel (0) target = $region5
    $region4: #{autoencoder_bn_forward.2} parent=1 // pred_region
      _
    $region5: #{autoencoder_bn_forward.2} parent=1 // pred_fallthru
      _
    // Predicated region
    $region6: #{autoencoder_bn_forward.2} parent=1 // pred_check
      _
    $region7: #{autoencoder_bn_forward.2} parent=1 // pred_check_branch
      %16 = sbr.rel (0) target = $region9
    $region8: #{autoencoder_bn_forward.2} parent=1 // pred_region
      %s18 = ssub.s32 1024, 1024
      %19 = vsyncadd [#allocation4], %s18
      %s20 = sshll.u32 [#allocation3], 4
      %s21 = int_to_ptr.vmem [resolvable:$true] %s20
      %26 = dma.hbm_to_vmem [thread:$0]  %s1, 1024, %s21, [#allocation4], 64, 64, 4
    $region9: #{autoencoder_bn_forward.2} parent=1 // pred_fallthru
      _
    // Predicated region
    $region10: #{autoencoder_bn_forward.2} parent=1 // pred_check
      _
    $region11: #{autoencoder_bn_forward.2} parent=1 // pred_check_branch
      %28 = sbr.rel (0) target = $region13
    $region12: #{autoencoder_bn_forward.2} parent=1 // pred_region
      %s30 = ssub.s32 16, 16
      %31 = vsyncadd [#allocation6], %s30
      %s33 = sshll.u32 [#allocation5], 4
      %s34 = int_to_ptr.vmem [resolvable:$true] %s33
      %36 = dma.hbm_to_vmem [thread:$0]  %s2, 16, %s34, [#allocation6]
    $region13: #{autoencoder_bn_forward.2} parent=1 // pred_fallthru
      _
    // Predicated region
    $region14: #{autoencoder_bn_forward.2} parent=1 // pred_check
      _
    $region15: #{autoencoder_bn_forward.2} parent=1 // pred_check_branch
      %38 = sbr.rel (0) target = $region17
    $region16: #{autoencoder_bn_forward.2} parent=1 // pred_region
      %s40 = ssub.s32 16, 16
      %41 = vsyncadd [#allocation6], %s40
      %s43 = sshll.u32 [#allocation7], 4
      %s44 = int_to_ptr.vmem [resolvable:$true] %s43
      %46 = dma.hbm_to_vmem [thread:$0]  %s3, 16, %s44, [#allocation6]
    $region17: #{autoencoder_bn_forward.2} parent=1 // pred_fallthru
      _
    // Predicated region
    $region18: #{autoencoder_bn_forward.2} parent=1 // pred_check
      _
    $region19: #{autoencoder_bn_forward.2} parent=1 // pred_check_branch
      %48 = sbr.rel (0) target = $region21
    $region20: #{autoencoder_bn_forward.2} parent=1 // pred_region
      %s50 = ssub.s32 16, 16
      %51 = vsyncadd [#allocation9], %s50
      %s53 = sshll.u32 [#allocation8], 4
      %s54 = int_to_ptr.vmem [resolvable:$true] %s53
      %56 = dma.hbm_to_vmem [thread:$0]  %s4, 16, %s54, [#allocation9]
    $region21: #{autoencoder_bn_forward.2} parent=1 // pred_fallthru
      _
    // Predicated region
    $region22: #{autoencoder_bn_forward.2} parent=1 // pred_check
      _
    $region23: #{autoencoder_bn_forward.2} parent=1 // pred_check_branch
      %58 = sbr.rel (0) target = $region25
    $region24: #{autoencoder_bn_forward.2} parent=1 // pred_region
      %59 = dma.done [#allocation4], 1024
    $region25: #{autoencoder_bn_forward.2} parent=1 // pred_fallthru
      _
    // Predicated region
    $region26: #{autoencoder_bn_forward.2} parent=1 // pred_check
      _
    $region27: #{autoencoder_bn_forward.2} parent=1 // pred_check_branch
      %61 = sbr.rel (0) target = $region29
    $region28: #{autoencoder_bn_forward.2} parent=1 // pred_region
      %62 = dma.done [#allocation6], 16
    $region29: #{autoencoder_bn_forward.2} parent=1 // pred_fallthru
      _
    // Predicated region
    $region30: #{autoencoder_bn_forward.2} parent=1 // pred_check
      _
    $region31: #{autoencoder_bn_forward.2} parent=1 // pred_check_branch
      %64 = sbr.rel (0) target = $region33
    $region32: #{autoencoder_bn_forward.2} parent=1 // pred_region
      %65 = dma.done [#allocation6], 16
    $region33: #{autoencoder_bn_forward.2} parent=1 // pred_fallthru
      _
    // Predicated region
    $region34: #{autoencoder_bn_forward.2} parent=1 // pred_check
      _
    $region35: #{autoencoder_bn_forward.2} parent=1 // pred_check_branch
      %67 = sbr.rel (0) target = $region37
    $region36: #{autoencoder_bn_forward.2} parent=1 // pred_region
      %68 = dma.done [#allocation9], 16
    $region37: #{autoencoder_bn_forward.2} parent=1 // pred_fallthru
      _
    %p70 = scmp.eq.s32.totalorder 0, 0
    // Predicated region
    $region38: #{autoencoder_bn_forward.2} parent=1 // pred_check
      %p71 = pneg %p70
    $region39: #{autoencoder_bn_forward.2} parent=1 // pred_check_branch
      %73 = sbr.rel (%p71) target = $region41
    $region40: #{autoencoder_bn_forward.2} parent=1 // pred_region
      %74 = vst [vmem:[#allocation2] sm:$0xff] 0.0
    $region41: #{autoencoder_bn_forward.2} parent=1 // pred_fallthru
      _
    %v75 = vld [vmem:[#allocation2] sm:$0xff]
    %v76 = vld [vmem:[%s0] sm:$0xf]
    %v77 = vld [vmem:[#allocation3] sm:$0xf]
    %v78 = vld [vmem:[#allocation3 + $0x4] sm:$0xf]
    %v79 = vld [vmem:[#allocation3 + $0x8] sm:$0xf]
    %v80 = vld [vmem:[#allocation3 + $0xc] sm:$0xf]
    %v81 = vld [vmem:[#allocation3 + $0x10] sm:$0xf]
    %v82 = vld [vmem:[#allocation3 + $0x14] sm:$0xf]
    %v83 = vld [vmem:[#allocation3 + $0x18] sm:$0xf]
    %v84 = vld [vmem:[#allocation3 + $0x1c] sm:$0xf]
    %v85 = vld [vmem:[#allocation3 + $0x20] sm:$0xf]
    %v86 = vld [vmem:[#allocation3 + $0x24] sm:$0xf]
    %v87 = vld [vmem:[#allocation3 + $0x28] sm:$0xf]
    %v88 = vld [vmem:[#allocation3 + $0x2c] sm:$0xf]
    %v89 = vld [vmem:[#allocation3 + $0x30] sm:$0xf]
    %v90 = vld [vmem:[#allocation3 + $0x34] sm:$0xf]
    %v91 = vld [vmem:[#allocation3 + $0x38] sm:$0xf]
    %v92 = vld [vmem:[#allocation3 + $0x3c] sm:$0xf]
    %v109 = vunpack.c.l.b16 %v77
    %v110 = vunpack.c.l.b16 %v78
    %v111 = vunpack.c.l.b16 %v79
    %v112 = vunpack.c.l.b16 %v80
    %v113 = vunpack.c.l.b16 %v81
    %v114 = vunpack.c.l.b16 %v82
    %v115 = vunpack.c.l.b16 %v83
    %v116 = vunpack.c.l.b16 %v84
    %v117 = vunpack.c.l.b16 %v85
    %v118 = vunpack.c.l.b16 %v86
    %v119 = vunpack.c.l.b16 %v87
    %v120 = vunpack.c.l.b16 %v88
    %v121 = vunpack.c.l.b16 %v89
    %v122 = vunpack.c.l.b16 %v90
    %v123 = vunpack.c.l.b16 %v91
    %v124 = vunpack.c.l.b16 %v92
    %v125 = vpack.c.b16 %v110, %v109
    %v126 = vpack.c.b16 %v112, %v111
    %v127 = vpack.c.b16 %v114, %v113
    %v128 = vpack.c.b16 %v116, %v115
    %v129 = vpack.c.b16 %v118, %v117
    %v130 = vpack.c.b16 %v120, %v119
    %v131 = vpack.c.b16 %v122, %v121
    %v132 = vpack.c.b16 %v124, %v123
    %141 = vmatprep.subr.bf16.mxu0 0
    %142 = vmatpush1.bf16.msra.mxu0 %v132
    %143 = vmatprep.subr.bf16.mxu0 0
    %144 = vmatpush1.bf16.msra.mxu0 %v131
    %145 = vmatprep.subr.bf16.mxu0 0
    %146 = vmatpush1.bf16.msra.mxu0 %v130
    %147 = vmatprep.subr.bf16.mxu0 0
    %148 = vmatpush1.bf16.msra.mxu0 %v129
    %149 = vmatprep.subr.bf16.mxu0 0
    %150 = vmatpush1.bf16.msra.mxu0 %v128
    %151 = vmatprep.subr.bf16.mxu0 0
    %152 = vmatpush1.bf16.msra.mxu0 %v127
    %153 = vmatprep.subr.bf16.mxu0 0
    %154 = vmatpush1.bf16.msra.mxu0 %v126
    %155 = vmatprep.subr.bf16.mxu0 0
    %156 = vmatpush1.bf16.msra.mxu0 %v125
    %157 = vmatprep.subr.bf16.mxu0 0
    %158 = vmatpush2.bf16.msra.mxu0 0
    %159 = vmatprep.subr.bf16.mxu0 0
    %160 = vmatpush2.bf16.msra.mxu0 0
    %161 = vmatprep.subr.bf16.mxu0 0
    %162 = vmatpush2.bf16.msra.mxu0 0
    %163 = vmatprep.subr.bf16.mxu0 0
    %164 = vmatpush2.bf16.msra.mxu0 0
    %165 = vmatprep.subr.bf16.mxu0 0
    %166 = vmatpush2.bf16.msra.mxu0 0
    %167 = vmatprep.subr.bf16.mxu0 0
    %168 = vmatpush2.bf16.msra.mxu0 0
    %169 = vmatprep.subr.bf16.mxu0 0
    %170 = vmatpush2.bf16.msra.mxu0 0
    %171 = vmatprep.subr.bf16.mxu0 0
    %172 = vmatpush2.bf16.msra.mxu0 0
    %173 = vmatprep.mubr.bf16.mxu0 0
    %174 = vmatmul.mubr.bf16.gmra.mxu0 %v76
    %v175 = vpop.f32.mrf.mxu0
    %v176 = vadd.f32 0.0, %v175
    %v177 = vpop.f32.mrf.mxu0
    %v178 = vpop.f32.mrf.mxu0
    %v179 = vpop.f32.mrf.mxu0
    %180 = vdwg.mxu0
    %v181 = vadd.f32 %v75, %v176
    %182 = vst [vmem:[#allocation2] sm:$0xff] %v181
    // Predicated region
    $region42: #{autoencoder_bn_forward.2} parent=1 // pred_check
      %p183 = pneg %p70
    $region43: #{autoencoder_bn_forward.2} parent=1 // pred_check_branch
      %185 = sbr.rel (%p183) target = $region45
    $region44: #{autoencoder_bn_forward.2} parent=1 // pred_region
      %v186 = vld [vmem:[#allocation2] sm:$0xff]
      %v187 = vld [vmem:[#allocation5] sm:$0x1]
      %v189 = vlaneseq
      %v190 = vshrl.u32 %v189, 7
      %v191 = vsub.s32 0, %v190
      %v192 = vrot.slane %v187, %v191
      %v194 = vadd.f32 %v186, %v192
      %v195 = vrot.slane %v194, 4
      %v196 = vadd.f32 %v194, %v195
      %v197 = vrot.slane %v196, 2
      %v198 = vadd.f32 %v196, %v197
      %v199 = vrot.slane %v198, 1
      %v200 = vadd.f32 %v198, %v199
      %v201 = vrcp.pop 8.0
      %v202 = vmul.f32 %v200, %v201
      %v203 = vsub.f32 %v194, %v202
      %v204 = vmul.f32 %v203, %v203
      %v205 = vrot.slane %v204, 4
      %v206 = vadd.f32 %v204, %v205
      %v207 = vrot.slane %v206, 2
      %v208 = vadd.f32 %v206, %v207
      %v209 = vrot.slane %v208, 1
      %v210 = vadd.f32 %v208, %v209
      %v211 = vmul.f32 %v210, %v201
      %v212 = vld [vmem:[#allocation7] sm:$0x1]
      %v213 = vadd.f32 %v211, 1e-05
      %v214 = vrsqrt.pop %v213
      %v215 = vmul.f32 %v212, %v214
      %v216 = vld [vmem:[#allocation8] sm:$0x1]
      %v217 = vmul.f32 %v202, %v215
      %v218 = vsub.f32 %v216, %v217
      %v220 = vlaneseq
      %v221 = vshrl.u32 %v220, 7
      %v222 = vsub.s32 0, %v221
      %v223 = vrot.slane %v215, %v222
      %v225 = vmul.f32 %v194, %v223
      %v227 = vlaneseq
      %v228 = vshrl.u32 %v227, 7
      %v229 = vsub.s32 0, %v228
      %v230 = vrot.slane %v218, %v229
      %v232 = vadd.f32 %v225, %v230
      %v233 = vpack.c.bf16 %v232, %v232
      %234 = vst [vmem:[%s5] sm:$0xf] %v233
    $region45: #{autoencoder_bn_forward.2} parent=1 // pred_fallthru
      _
    // Predicated region
    $region46: #{autoencoder_bn_forward.2} parent=1 // pred_check
      _
    $region47: #{autoencoder_bn_forward.2} parent=1 // pred_check_branch
      %236 = sbr.rel (0) target = $region49
    $region48: #{autoencoder_bn_forward.2} parent=1 // pred_region
      _
    $region49: #{autoencoder_bn_forward.2} parent=1 // pred_fallthru
      _
    // Predicated region
    $region50: #{autoencoder_bn_forward.2} parent=1 // pred_check
      _
    $region51: #{autoencoder_bn_forward.2} parent=1 // pred_check_branch
      %238 = sbr.rel (0) target = $region53
    $region52: #{autoencoder_bn_forward.2} parent=1 // pred_region
      _
    $region53: #{autoencoder_bn_forward.2} parent=1 // pred_fallthru
      _
    %239 = vsyncpa [#allocation4], 1
    %240 = vsyncpa [#allocation6], 1
    %241 = vsyncpa [#allocation9], 1

// kernel: autoencoder_bn_forward.3
$region0: #{autoencoder_bn_forward.3}
  #allocation0 [shape = 'u32[]', space=smem, size = 0x4, offset = 0x4, fixed_abs, tag = 'smem constant byte address 0x4 - core index']
  #allocation1 [shape = 'u32[144,128]{1,0:T(1,128)}', space=vmem, size = 0x12000, scoped, tag = 'internal scratch']
  %s0 = inlined_call_operand.vmem [shape: bf16[8,128], index: 0, kind: input, shape index: {}]
  %s1 = inlined_call_operand.vmem [shape: bf16[128,128], index: 1, kind: input, shape index: {}]
  %s2 = inlined_call_operand.vmem [shape: f32[1,128], index: 2, kind: input, shape index: {}]
  %s3 = inlined_call_operand.hbm [shape: f32[8,128], index: 3, kind: output, shape index: {}]
  %s4 = sld [smem:[#allocation0]]
  $region22: #{autoencoder_bn_forward.3} parent=0
    _
  %s6 = ssub.s32 1, %s4
  %s7 = scalar_select 0, %s6, %s4
  $region1: #{autoencoder_bn_forward.3} parent=0
    #allocation2 [shape = 'u8[4096]{0}', space=vmem, size = 0x1000, scoped, tag = 'output window, operand 0, single buffered']
    #allocation3 [shape = 's32[1]{0}', space=sflag, size = 0x4, scoped, tag = 'scoped memory for autoencoder_bn_forward.3']
    %8 = vsyncpa [#allocation3], 0
    // Predicated region
    $region2: #{autoencoder_bn_forward.3} parent=1 // pred_check
      _
    $region3: #{autoencoder_bn_forward.3} parent=1 // pred_check_branch
      %10 = sbr.rel (0) target = $region5
    $region4: #{autoencoder_bn_forward.3} parent=1 // pred_region
      _
    $region5: #{autoencoder_bn_forward.3} parent=1 // pred_fallthru
      _
    // Predicated region
    $region6: #{autoencoder_bn_forward.3} parent=1 // pred_check
      _
    $region7: #{autoencoder_bn_forward.3} parent=1 // pred_check_branch
      %12 = sbr.rel (0) target = $region9
    $region8: #{autoencoder_bn_forward.3} parent=1 // pred_region
      _
    $region9: #{autoencoder_bn_forward.3} parent=1 // pred_fallthru
      _
    // Predicated region
    $region10: #{autoencoder_bn_forward.3} parent=1 // pred_check
      _
    $region11: #{autoencoder_bn_forward.3} parent=1 // pred_check_branch
      %14 = sbr.rel (0) target = $region13
    $region12: #{autoencoder_bn_forward.3} parent=1 // pred_region
      _
    $region13: #{autoencoder_bn_forward.3} parent=1 // pred_fallthru
      _
    %v16 = vld [vmem:[%s0] sm:$0xf]
    %v17 = vld [vmem:[%s1] sm:$0xf]
    %v18 = vld [vmem:[%s1 + $0x4] sm:$0xf]
    %v19 = vld [vmem:[%s1 + $0x8] sm:$0xf]
    %v20 = vld [vmem:[%s1 + $0xc] sm:$0xf]
    %v21 = vld [vmem:[%s1 + $0x10] sm:$0xf]
    %v22 = vld [vmem:[%s1 + $0x14] sm:$0xf]
    %v23 = vld [vmem:[%s1 + $0x18] sm:$0xf]
    %v24 = vld [vmem:[%s1 + $0x1c] sm:$0xf]
    %v25 = vld [vmem:[%s1 + $0x20] sm:$0xf]
    %v26 = vld [vmem:[%s1 + $0x24] sm:$0xf]
    %v27 = vld [vmem:[%s1 + $0x28] sm:$0xf]
    %v28 = vld [vmem:[%s1 + $0x2c] sm:$0xf]
    %v29 = vld [vmem:[%s1 + $0x30] sm:$0xf]
    %v30 = vld [vmem:[%s1 + $0x34] sm:$0xf]
    %v31 = vld [vmem:[%s1 + $0x38] sm:$0xf]
    %v32 = vld [vmem:[%s1 + $0x3c] sm:$0xf]
    %v33 = vld [vmem:[%s2] sm:$0x1]
    %v35 = vlaneseq
    %v36 = vshrl.u32 %v35, 7
    %v37 = vsub.s32 0, %v36
    %v38 = vrot.slane %v33, %v37
    %v56 = vunpack.c.l.b16 %v17
    %v57 = vunpack.c.l.b16 %v18
    %v58 = vunpack.c.l.b16 %v19
    %v59 = vunpack.c.l.b16 %v20
    %v60 = vunpack.c.l.b16 %v21
    %v61 = vunpack.c.l.b16 %v22
    %v62 = vunpack.c.l.b16 %v23
    %v63 = vunpack.c.l.b16 %v24
    %v64 = vunpack.c.l.b16 %v25
    %v65 = vunpack.c.l.b16 %v26
    %v66 = vunpack.c.l.b16 %v27
    %v67 = vunpack.c.l.b16 %v28
    %v68 = vunpack.c.l.b16 %v29
    %v69 = vunpack.c.l.b16 %v30
    %v70 = vunpack.c.l.b16 %v31
    %v71 = vunpack.c.l.b16 %v32
    %v72 = vpack.c.b16 %v57, %v56
    %v73 = vpack.c.b16 %v59, %v58
    %v74 = vpack.c.b16 %v61, %v60
    %v75 = vpack.c.b16 %v63, %v62
    %v76 = vpack.c.b16 %v65, %v64
    %v77 = vpack.c.b16 %v67, %v66
    %v78 = vpack.c.b16 %v69, %v68
    %v79 = vpack.c.b16 %v71, %v70
    %88 = vmatprep.subr.bf16.mxu0 0
    %89 = vmatpush1.bf16.msra.mxu0 %v79
    %90 = vmatprep.subr.bf16.mxu0 0
    %91 = vmatpush1.bf16.msra.mxu0 %v78
    %92 = vmatprep.subr.bf16.mxu0 0
    %93 = vmatpush1.bf16.msra.mxu0 %v77
    %94 = vmatprep.subr.bf16.mxu0 0
    %95 = vmatpush1.bf16.msra.mxu0 %v76
    %96 = vmatprep.subr.bf16.mxu0 0
    %97 = vmatpush1.bf16.msra.mxu0 %v75
    %98 = vmatprep.subr.bf16.mxu0 0
    %99 = vmatpush1.bf16.msra.mxu0 %v74
    %100 = vmatprep.subr.bf16.mxu0 0
    %101 = vmatpush1.bf16.msra.mxu0 %v73
    %102 = vmatprep.subr.bf16.mxu0 0
    %103 = vmatpush1.bf16.msra.mxu0 %v72
    %104 = vmatprep.subr.bf16.mxu0 0
    %105 = vmatpush2.bf16.msra.mxu0 0
    %106 = vmatprep.subr.bf16.mxu0 0
    %107 = vmatpush2.bf16.msra.mxu0 0
    %108 = vmatprep.subr.bf16.mxu0 0
    %109 = vmatpush2.bf16.msra.mxu0 0
    %110 = vmatprep.subr.bf16.mxu0 0
    %111 = vmatpush2.bf16.msra.mxu0 0
    %112 = vmatprep.subr.bf16.mxu0 0
    %113 = vmatpush2.bf16.msra.mxu0 0
    %114 = vmatprep.subr.bf16.mxu0 0
    %115 = vmatpush2.bf16.msra.mxu0 0
    %116 = vmatprep.subr.bf16.mxu0 0
    %117 = vmatpush2.bf16.msra.mxu0 0
    %118 = vmatprep.subr.bf16.mxu0 0
    %119 = vmatpush2.bf16.msra.mxu0 0
    %120 = vmatprep.mubr.bf16.mxu0 0
    %121 = vmatmul.mubr.bf16.gmra.mxu0 %v16
    %v122 = vpop.f32.mrf.mxu0
    %v123 = vadd.f32 %v38, %v122
    %v124 = vpop.f32.mrf.mxu0
    %v125 = vpop.f32.mrf.mxu0
    %v126 = vpop.f32.mrf.mxu0
    %127 = vdwg.mxu0
    %128 = vst [vmem:[#allocation2] sm:$0xff] %v123
    // Predicated region
    $region14: #{autoencoder_bn_forward.3} parent=1 // pred_check
      _
    $region15: #{autoencoder_bn_forward.3} parent=1 // pred_check_branch
      %130 = sbr.rel (0) target = $region17
    $region16: #{autoencoder_bn_forward.3} parent=1 // pred_region
      %s132 = ssub.s32 128, 128
      %133 = vsyncadd [#allocation3], %s132
      %s135 = sshll.u32 [#allocation2], 4
      %s136 = int_to_ptr.vmem [resolvable:$true] %s135
      %138 = dma.vmem_to_hbm [thread:$0]  %s136, 128, %s3, [#allocation3]
    $region17: #{autoencoder_bn_forward.3} parent=1 // pred_fallthru
      _
    // Predicated region
    $region18: #{autoencoder_bn_forward.3} parent=1 // pred_check
      _
    $region19: #{autoencoder_bn_forward.3} parent=1 // pred_check_branch
      %140 = sbr.rel (0) target = $region21
    $region20: #{autoencoder_bn_forward.3} parent=1 // pred_region
      %141 = dma.done [#allocation3], 128
    $region21: #{autoencoder_bn_forward.3} parent=1 // pred_fallthru
      _
    %142 = vsyncpa [#allocation3], 1

</llo_original>
